<compile_context>
chip_gen: v5e
topology: v5e:2x2
jax: 0.10.0
libtpu: 0.0.40
codegen_flags: <defaults>
</compile_context>

<pallas_src>
import functools

import jax
import jax.numpy as jnp
from jax.experimental import pallas as pl
from jax.experimental.pallas import tpu as pltpu


# ----------------------------------------------------------------------------
# Fused Pallas kernel: BCE(sum) + KLD + weighted total, all in one invocation.
# ----------------------------------------------------------------------------
def _vae_loss_kernel(recon_ref, x_ref, mu_ref, logvar_ref,
                     total_ref, bce_ref, kld_ref, *, kld_weight):
    recon = recon_ref[...]          # (N, D)  flattened reconstructions in (0, 1)
    x = x_ref[...]                  # (N, D)  flattened targets in [0, 1]

    # PyTorch binary_cross_entropy clamps the log terms at -100.
    log_r = jnp.maximum(jnp.log(recon), -100.0)
    log_1mr = jnp.maximum(jnp.log(1.0 - recon), -100.0)
    bce = -jnp.sum(x * log_r + (1.0 - x) * log_1mr,
                   axis=(0, 1), keepdims=True)                     # (1, 1)

    mu = mu_ref[...]                # (N, L)
    logvar = logvar_ref[...]        # (N, L)
    kld = -0.5 * jnp.sum(1.0 + logvar - mu * mu - jnp.exp(logvar),
                         axis=(0, 1), keepdims=True)               # (1, 1)

    bce_ref[...] = bce
    kld_ref[...] = kld
    total_ref[...] = bce + kld_weight * kld


def vae_loss(recon_x, x, mu, logvar, kld_weight=1.0):
    """Pallas implementation of VAELoss.forward. Returns (total, BCE, KLD)."""
    batch = x.shape[0]
    recon_f = recon_x.reshape(batch, -1).astype(jnp.float32)
    x_f = x.reshape(batch, -1).astype(jnp.float32)
    # Trace-time shape check (mirrors the PyTorch assert).
    assert recon_f.shape == x_f.shape, \
        f"Shape mismatch: {recon_f.shape} vs {x_f.shape}"
    # TODO(synk): the PyTorch module also runtime-asserts recon_x in [0, 1];
    # data-dependent asserts have no clean in-kernel equivalent and are skipped.

    scalar = jax.ShapeDtypeStruct((1, 1), jnp.float32)
    total, bce, kld = pl.pallas_call(
        functools.partial(_vae_loss_kernel, kld_weight=float(kld_weight)),
        out_shape=(scalar, scalar, scalar),
        in_specs=[pl.BlockSpec(memory_space=pltpu.MemorySpace.VMEM)] * 4,
        out_specs=(pl.BlockSpec(memory_space=pltpu.MemorySpace.VMEM),) * 3,
    )(recon_f, x_f, mu.astype(jnp.float32), logvar.astype(jnp.float32))
    return total[0, 0], bce[0, 0], kld[0, 0]


# ----------------------------------------------------------------------------
# Pure-JAX reference (mirrors torch.nn.functional.binary_cross_entropy + KLD)
# ----------------------------------------------------------------------------
def vae_loss_reference(recon_x, x, mu, logvar, kld_weight=1.0):
    batch = x.shape[0]
    r = recon_x.reshape(batch, -1).astype(jnp.float32)
    t = x.reshape(batch, -1).astype(jnp.float32)
    log_r = jnp.maximum(jnp.log(r), -100.0)
    log_1mr = jnp.maximum(jnp.log(1.0 - r), -100.0)
    bce = -jnp.sum(t * log_r + (1.0 - t) * log_1mr)
    kld = -0.5 * jnp.sum(1.0 + logvar - mu * mu - jnp.exp(logvar))
    return bce + kld_weight * kld, bce, kld


# ----------------------------------------------------------------------------
# Main
# ----------------------------------------------------------------------------
if __name__ == "__main__":
    BATCH, C, H, W = 2, 3, 28, 28        # cVAE decoder output shape
    LATENT_DIM = 32
    KLD_WEIGHT = 1.0

    root = jax.random.PRNGKey(0)
    k1, k2, k3, k4 = jax.random.split(root, 4)
    # Reconstructions in (0, 1) (as if produced by a sigmoid decoder head).
    recon_x = jax.nn.sigmoid(jax.random.normal(k1, (BATCH, C, H, W), jnp.float32))
    # Targets in [0, 1].
    x = jax.random.uniform(k2, (BATCH, C, H, W), jnp.float32)
    mu = jax.random.normal(k3, (BATCH, LATENT_DIM), jnp.float32)
    logvar = 0.1 * jax.random.normal(k4, (BATCH, LATENT_DIM), jnp.float32)

    fn = jax.jit(functools.partial(vae_loss, kld_weight=KLD_WEIGHT))
    total, bce, kld = jax.block_until_ready(fn(recon_x, x, mu, logvar))

    ref_total, ref_bce, ref_kld = vae_loss_reference(
        recon_x, x, mu, logvar, kld_weight=KLD_WEIGHT)

    assert total.shape == () and bce.shape == () and kld.shape == ()
    assert jnp.allclose(bce, ref_bce, rtol=1e-4, atol=1e-3), \
        f"BCE mismatch: {bce} vs {ref_bce}"
    assert jnp.allclose(kld, ref_kld, rtol=1e-4, atol=1e-3), \
        f"KLD mismatch: {kld} vs {ref_kld}"
    assert jnp.allclose(total, ref_total, rtol=1e-4, atol=1e-3), \
        f"total mismatch: {total} vs {ref_total}"

    print("KERNEL_OK")
</pallas_src>

<mosaic_0001>
module attributes {stable_mosaic.version = 11 : i64} {
  func.func @_vae_loss_kernel(%arg0: memref<2x2352xf32, #tpu.memory_space<vmem>>, %arg1: memref<2x2352xf32, #tpu.memory_space<vmem>>, %arg2: memref<2x32xf32, #tpu.memory_space<vmem>>, %arg3: memref<2x32xf32, #tpu.memory_space<vmem>>, %arg4: memref<1x1xf32, #tpu.memory_space<vmem>>, %arg5: memref<1x1xf32, #tpu.memory_space<vmem>>, %arg6: memref<1x1xf32, #tpu.memory_space<vmem>>) attributes {dimension_semantics = [], scalar_prefetch = 0 : i64, scratch_operands = 0 : i64, tpu.core_type = #tpu.core_type<tc>} {
    %c0 = arith.constant 0 : index
    %c0_0 = arith.constant 0 : index
    %0 = vector.load %arg0[%c0, %c0_0] : memref<2x2352xf32, #tpu.memory_space<vmem>>, vector<2x2352xf32>
    %c0_1 = arith.constant 0 : index
    %c0_2 = arith.constant 0 : index
    %1 = vector.load %arg1[%c0_1, %c0_2] : memref<2x2352xf32, #tpu.memory_space<vmem>>, vector<2x2352xf32>
    %2 = math.log %0 : vector<2x2352xf32>
    %cst = arith.constant -1.000000e+02 : f32
    %3 = vector.broadcast %cst : f32 to vector<2x2352xf32>
    %4 = arith.maximumf %2, %3 : vector<2x2352xf32>
    %cst_3 = arith.constant 1.000000e+00 : f32
    %5 = vector.broadcast %cst_3 : f32 to vector<2x2352xf32>
    %6 = arith.subf %5, %0 : vector<2x2352xf32>
    %7 = math.log %6 : vector<2x2352xf32>
    %cst_4 = arith.constant -1.000000e+02 : f32
    %8 = vector.broadcast %cst_4 : f32 to vector<2x2352xf32>
    %9 = arith.maximumf %7, %8 : vector<2x2352xf32>
    %10 = arith.mulf %1, %4 : vector<2x2352xf32>
    %cst_5 = arith.constant 1.000000e+00 : f32
    %11 = vector.broadcast %cst_5 : f32 to vector<2x2352xf32>
    %12 = arith.subf %11, %1 : vector<2x2352xf32>
    %13 = arith.mulf %12, %9 : vector<2x2352xf32>
    %14 = arith.addf %10, %13 : vector<2x2352xf32>
    %15 = vector.shape_cast %14 : vector<2x2352xf32> to vector<1x2x2352xf32>
    %cst_6 = arith.constant dense<0.000000e+00> : vector<1xf32>
    %16 = vector.multi_reduction <add>, %15, %cst_6 [1, 2] : vector<1x2x2352xf32> to vector<1xf32>
    %17 = vector.shape_cast %16 : vector<1xf32> to vector<1x1x1xf32>
    %18 = vector.extract %17[0, 0, 0] : f32 from vector<1x1x1xf32>
    %19 = vector.broadcast %18 : f32 to vector<1x1xf32>
    %cst_7 = arith.constant 0.000000e+00 : f32
    %20 = vector.broadcast %cst_7 : f32 to vector<1x1xf32>
    %21 = arith.subf %20, %19 : vector<1x1xf32>
    %c0_8 = arith.constant 0 : index
    %c0_9 = arith.constant 0 : index
    %22 = vector.load %arg2[%c0_8, %c0_9] : memref<2x32xf32, #tpu.memory_space<vmem>>, vector<2x32xf32>
    %c0_10 = arith.constant 0 : index
    %c0_11 = arith.constant 0 : index
    %23 = vector.load %arg3[%c0_10, %c0_11] : memref<2x32xf32, #tpu.memory_space<vmem>>, vector<2x32xf32>
    %cst_12 = arith.constant 1.000000e+00 : f32
    %24 = vector.broadcast %cst_12 : f32 to vector<2x32xf32>
    %25 = arith.addf %24, %23 : vector<2x32xf32>
    %26 = arith.mulf %22, %22 : vector<2x32xf32>
    %27 = arith.subf %25, %26 : vector<2x32xf32>
    %28 = math.exp %23 : vector<2x32xf32>
    %29 = arith.subf %27, %28 : vector<2x32xf32>
    %30 = vector.shape_cast %29 : vector<2x32xf32> to vector<1x2x32xf32>
    %cst_13 = arith.constant dense<0.000000e+00> : vector<1xf32>
    %31 = vector.multi_reduction <add>, %30, %cst_13 [1, 2] : vector<1x2x32xf32> to vector<1xf32>
    %32 = vector.shape_cast %31 : vector<1xf32> to vector<1x1x1xf32>
    %33 = vector.extract %32[0, 0, 0] : f32 from vector<1x1x1xf32>
    %34 = vector.broadcast %33 : f32 to vector<1x1xf32>
    %cst_14 = arith.constant -5.000000e-01 : f32
    %35 = vector.broadcast %cst_14 : f32 to vector<1x1xf32>
    %36 = arith.mulf %35, %34 : vector<1x1xf32>
    %c0_15 = arith.constant 0 : index
    %c0_16 = arith.constant 0 : index
    %37 = vector.load %arg5[%c0_15, %c0_16] : memref<1x1xf32, #tpu.memory_space<vmem>>, vector<1x1xf32>
    tpu.vector_store %arg5[%c0_15, %c0_16], %21 {strides = array<i32>} : memref<1x1xf32, #tpu.memory_space<vmem>>, vector<1x1xf32>,
    %c0_17 = arith.constant 0 : index
    %c0_18 = arith.constant 0 : index
    %38 = vector.load %arg6[%c0_17, %c0_18] : memref<1x1xf32, #tpu.memory_space<vmem>>, vector<1x1xf32>
    tpu.vector_store %arg6[%c0_17, %c0_18], %36 {strides = array<i32>} : memref<1x1xf32, #tpu.memory_space<vmem>>, vector<1x1xf32>,
    %cst_19 = arith.constant 1.000000e+00 : f32
    %39 = vector.broadcast %cst_19 : f32 to vector<1x1xf32>
    %40 = arith.mulf %39, %36 : vector<1x1xf32>
    %41 = arith.addf %21, %40 : vector<1x1xf32>
    %c0_20 = arith.constant 0 : index
    %c0_21 = arith.constant 0 : index
    %42 = vector.load %arg4[%c0_20, %c0_21] : memref<1x1xf32, #tpu.memory_space<vmem>>, vector<1x1xf32>
    tpu.vector_store %arg4[%c0_20, %c0_21], %41 {strides = array<i32>} : memref<1x1xf32, #tpu.memory_space<vmem>>, vector<1x1xf32>,
    return
  }
}

</mosaic_0001>

<llo_original>
// kernel: vae_loss.1
$region0: #{vae_loss.1}
  #allocation0 [shape = 'u32[]', space=smem, size = 0x4, offset = 0x4, fixed_abs, tag = 'smem constant byte address 0x4 - core index']
  #allocation1 [shape = 'u32[72,128]{1,0:T(1,128)}', space=vmem, size = 0x9000, scoped, tag = 'internal scratch']
  %s0 = inlined_call_operand.vmem [shape: f32[2,2352], index: 0, kind: input, shape index: {}]
  %s1 = inlined_call_operand.vmem [shape: f32[2,2352], index: 1, kind: input, shape index: {}]
  %s2 = inlined_call_operand.vmem [shape: f32[2,32], index: 2, kind: input, shape index: {}]
  %s3 = inlined_call_operand.vmem [shape: f32[2,32], index: 3, kind: input, shape index: {}]
  %s4 = inlined_call_operand.hbm [shape: f32[1,1], index: 4, kind: output, shape index: {0}]
  %s5 = inlined_call_operand.hbm [shape: f32[1,1], index: 5, kind: output, shape index: {1}]
  %s6 = inlined_call_operand.hbm [shape: f32[1,1], index: 6, kind: output, shape index: {2}]
  %7 = xla_tuple %s4, %s5, %s6
  %s8 = sld [smem:[#allocation0]]
  $region42: #{vae_loss.1} parent=0
    _
  %s10 = ssub.s32 1, %s8
  %s11 = scalar_select 0, %s10, %s8
  $region1: #{vae_loss.1} parent=0
    #allocation2 [shape = 'u8[512]{0}', space=vmem, size = 0x400, scoped, tag = 'output window, operand 0, single buffered']
    #allocation3 [shape = 's32[1]{0}', space=sflag, size = 0x4, scoped, tag = 'scoped memory for vae_loss.1']
    #allocation4 [shape = 'u8[512]{0}', space=vmem, size = 0x400, scoped, tag = 'output window, operand 1, single buffered']
    #allocation5 [shape = 's32[1]{0}', space=sflag, size = 0x4, scoped, tag = 'scoped memory for vae_loss.1']
    #allocation6 [shape = 'u8[512]{0}', space=vmem, size = 0x400, scoped, tag = 'output window, operand 2, single buffered']
    %12 = vsyncpa [#allocation3], 0
    %13 = vsyncpa [#allocation5], 0
    // Predicated region
    $region2: #{vae_loss.1} parent=1 // pred_check
      _
    $region3: #{vae_loss.1} parent=1 // pred_check_branch
      %15 = sbr.rel (0) target = $region5
    $region4: #{vae_loss.1} parent=1 // pred_region
      _
    $region5: #{vae_loss.1} parent=1 // pred_fallthru
      _
    // Predicated region
    $region6: #{vae_loss.1} parent=1 // pred_check
      _
    $region7: #{vae_loss.1} parent=1 // pred_check_branch
      %17 = sbr.rel (0) target = $region9
    $region8: #{vae_loss.1} parent=1 // pred_region
      _
    $region9: #{vae_loss.1} parent=1 // pred_fallthru
      _
    // Predicated region
    $region10: #{vae_loss.1} parent=1 // pred_check
      _
    $region11: #{vae_loss.1} parent=1 // pred_check_branch
      %19 = sbr.rel (0) target = $region13
    $region12: #{vae_loss.1} parent=1 // pred_region
      _
    $region13: #{vae_loss.1} parent=1 // pred_fallthru
      _
    // Predicated region
    $region14: #{vae_loss.1} parent=1 // pred_check
      _
    $region15: #{vae_loss.1} parent=1 // pred_check_branch
      %21 = sbr.rel (0) target = $region17
    $region16: #{vae_loss.1} parent=1 // pred_region
      _
    $region17: #{vae_loss.1} parent=1 // pred_fallthru
      _
    %v22 = vld [vmem:[%s0] sm:$0xff]
    %v23 = vld [vmem:[%s0 + $0x8] sm:$0xff]
    %v24 = vld [vmem:[%s0 + $0x10] sm:$0xff]
    %v25 = vld [vmem:[%s0 + $0x18] sm:$0xff]
    %v26 = vld [vmem:[%s0 + $0x20] sm:$0x3f]
    %v27 = vld [vmem:[%s1] sm:$0xff]
    %v28 = vld [vmem:[%s1 + $0x8] sm:$0xff]
    %v29 = vld [vmem:[%s1 + $0x10] sm:$0xff]
    %v30 = vld [vmem:[%s1 + $0x18] sm:$0xff]
    %v31 = vld [vmem:[%s1 + $0x20] sm:$0x3f]
    %v32 = vlog2.pop %v22
    %v33 = vmul.f32 %v32, 0.6931472
    %v34 = vlog2.pop %v23
    %v35 = vmul.f32 %v34, 0.6931472
    %v36 = vlog2.pop %v24
    %v37 = vmul.f32 %v36, 0.6931472
    %v38 = vlog2.pop %v25
    %v39 = vmul.f32 %v38, 0.6931472
    %v40 = vlog2.pop %v26
    %v41 = vmul.f32 %v40, 0.6931472
    %v42 = vmax.f32 %v33, -100.0
    %v43 = vmax.f32 %v35, -100.0
    %v44 = vmax.f32 %v37, -100.0
    %v45 = vmax.f32 %v39, -100.0
    %v46 = vmax.f32 %v41, -100.0
    %v47 = vsub.f32 1.0, %v22
    %v48 = vsub.f32 1.0, %v23
    %v49 = vsub.f32 1.0, %v24
    %v50 = vsub.f32 1.0, %v25
    %v51 = vsub.f32 1.0, %v26
    %v52 = vlog2.pop %v47
    %v53 = vmul.f32 %v52, 0.6931472
    %v54 = vlog2.pop %v48
    %v55 = vmul.f32 %v54, 0.6931472
    %v56 = vlog2.pop %v49
    %v57 = vmul.f32 %v56, 0.6931472
    %v58 = vlog2.pop %v50
    %v59 = vmul.f32 %v58, 0.6931472
    %v60 = vlog2.pop %v51
    %v61 = vmul.f32 %v60, 0.6931472
    %v62 = vmax.f32 %v53, -100.0
    %v63 = vmax.f32 %v55, -100.0
    %v64 = vmax.f32 %v57, -100.0
    %v65 = vmax.f32 %v59, -100.0
    %v66 = vmax.f32 %v61, -100.0
    %v67 = vmul.f32 %v27, %v42
    %v68 = vmul.f32 %v28, %v43
    %v69 = vmul.f32 %v29, %v44
    %v70 = vmul.f32 %v30, %v45
    %v71 = vmul.f32 %v31, %v46
    %v72 = vsub.f32 1.0, %v27
    %v73 = vsub.f32 1.0, %v28
    %v74 = vsub.f32 1.0, %v29
    %v75 = vsub.f32 1.0, %v30
    %v76 = vsub.f32 1.0, %v31
    %v77 = vmul.f32 %v72, %v62
    %v78 = vmul.f32 %v73, %v63
    %v79 = vmul.f32 %v74, %v64
    %v80 = vmul.f32 %v75, %v65
    %v81 = vmul.f32 %v76, %v66
    %v82 = vadd.f32 %v67, %v77
    %v83 = vadd.f32 %v68, %v78
    %v84 = vadd.f32 %v69, %v79
    %v85 = vadd.f32 %v70, %v80
    %v86 = vadd.f32 %v71, %v81
    %92 = vst [vmem:[#allocation1] ss:$4 sm:$0xff] %v82
    %s93 = scalar_lea.vmem [#allocation1], 32
    %94 = vst [vmem:[%s93] ss:$4 sm:$0xff] %v83
    %v95 = vld.sshfl [vmem:[#allocation1] sm:$0xff pattern:$0x73625140]
    %v96 = vld.sshfl [vmem:[#allocation1 + $0x8] sm:$0xff pattern:$0x73625140]
    %v97 = vld.sshfl [vmem:[#allocation1 + $0x10] sm:$0xff pattern:$0x73625140]
    %v98 = vld.sshfl [vmem:[#allocation1 + $0x18] sm:$0xff pattern:$0x73625140]
    %v99 = vld.sshfl [vmem:[#allocation1 + $0x20] sm:$0xff pattern:$0x73625140]
    %v100 = vld.sshfl [vmem:[#allocation1 + $0x28] sm:$0xff pattern:$0x73625140]
    %v101 = vld.sshfl [vmem:[#allocation1 + $0x30] sm:$0xff pattern:$0x73625140]
    %v102 = vld.sshfl [vmem:[#allocation1 + $0x38] sm:$0xff pattern:$0x73625140]
    %103 = vst [vmem:[#allocation1] ss:$4 sm:$0xff] %v84
    %104 = vst [vmem:[%s93] ss:$4 sm:$0xff] %v85
    %v105 = vld.sshfl [vmem:[#allocation1] sm:$0xff pattern:$0x73625140]
    %v106 = vld.sshfl [vmem:[#allocation1 + $0x8] sm:$0xff pattern:$0x73625140]
    %v107 = vld.sshfl [vmem:[#allocation1 + $0x10] sm:$0xff pattern:$0x73625140]
    %v108 = vld.sshfl [vmem:[#allocation1 + $0x18] sm:$0xff pattern:$0x73625140]
    %v109 = vld.sshfl [vmem:[#allocation1 + $0x20] sm:$0xff pattern:$0x73625140]
    %v110 = vld.sshfl [vmem:[#allocation1 + $0x28] sm:$0xff pattern:$0x73625140]
    %v111 = vld.sshfl [vmem:[#allocation1 + $0x30] sm:$0xff pattern:$0x73625140]
    %v112 = vld.sshfl [vmem:[#allocation1 + $0x38] sm:$0xff pattern:$0x73625140]
    %113 = vst [vmem:[#allocation1] ss:$4 sm:$0xff] %v86
    %v114 = vld.sshfl [vmem:[#allocation1] sm:$0xff pattern:$0x73625140]
    %v115 = vld.sshfl [vmem:[#allocation1 + $0x8] sm:$0xff pattern:$0x73625140]
    %v116 = vld.sshfl [vmem:[#allocation1 + $0x10] sm:$0xff pattern:$0x73625140]
    %vm136 = vcmask 1041408
    %v137 = vsel %vm136, %v95, 0.0
    %v138 = vsel %vm136, %v96, 0.0
    %v139 = vadd.f32 %v137, %v138
    %v140 = vsel %vm136, %v97, 0.0
    %v141 = vadd.f32 %v139, %v140
    %v142 = vsel %vm136, %v98, 0.0
    %v143 = vadd.f32 %v141, %v142
    %v144 = vsel %vm136, %v99, 0.0
    %v145 = vadd.f32 %v143, %v144
    %v146 = vsel %vm136, %v100, 0.0
    %v147 = vadd.f32 %v145, %v146
    %v148 = vsel %vm136, %v101, 0.0
    %v149 = vadd.f32 %v147, %v148
    %v150 = vsel %vm136, %v102, 0.0
    %v151 = vadd.f32 %v149, %v150
    %v152 = vsel %vm136, %v105, 0.0
    %v153 = vadd.f32 %v151, %v152
    %v154 = vsel %vm136, %v106, 0.0
    %v155 = vadd.f32 %v153, %v154
    %v156 = vsel %vm136, %v107, 0.0
    %v157 = vadd.f32 %v155, %v156
    %v158 = vsel %vm136, %v108, 0.0
    %v159 = vadd.f32 %v157, %v158
    %v160 = vsel %vm136, %v109, 0.0
    %v161 = vadd.f32 %v159, %v160
    %v162 = vsel %vm136, %v110, 0.0
    %v163 = vadd.f32 %v161, %v162
    %v164 = vsel %vm136, %v111, 0.0
    %v165 = vadd.f32 %v163, %v164
    %v166 = vsel %vm136, %v112, 0.0
    %v167 = vadd.f32 %v165, %v166
    %v168 = vsel %vm136, %v114, 0.0
    %v169 = vadd.f32 %v167, %v168
    %v170 = vsel %vm136, %v115, 0.0
    %v171 = vadd.f32 %v169, %v170
    %vm172 = vcmask 386048
    %v173 = vsel %vm172, %v116, 0.0
    %v174 = vadd.f32 %v171, %v173
    %175 = vadd.xlane.f32.xlu0 %v174
    %v176 = vpop.xlane.xlu0 %175
    %v177 = vrot.slane %v176, 4
    %v178 = vadd.f32 %v176, %v177
    %v179 = vrot.slane %v178, 2
    %v180 = vadd.f32 %v178, %v179
    %v181 = vrot.slane %v180, 1
    %v182 = vadd.f32 %v180, %v181
    %s183 = vtos %v182
    %v184 = vstv %s183
    %v185 = vsub.f32 0.0, %v184
    %v186 = vld [vmem:[%s2] sm:$0x3]
    %v187 = vld [vmem:[%s3] sm:$0x3]
    %v188 = vadd.f32 %v187, 1.0
    %v189 = vmul.f32 %v186, %v186
    %v190 = vsub.f32 %v188, %v189
    %v191 = vmul.f32 %v187, 1.442695
    %v192 = vpow.pop %v191
    %v193 = vsub.f32 %v190, %v192
    %vm194 = vcmask 254976
    %v195 = vsel %vm194, %v193, 0.0
    %196 = vadd.xlane.f32.xlu0 %v195
    %v197 = vpop.xlane.xlu0 %196
    %v198 = vrot.slane %v197, 4
    %v199 = vadd.f32 %v197, %v198
    %v200 = vrot.slane %v199, 2
    %v201 = vadd.f32 %v199, %v200
    %v202 = vrot.slane %v201, 1
    %v203 = vadd.f32 %v201, %v202
    %s204 = vtos %v203
    %v205 = vstv %s204
    %v206 = vmul.f32 %v205, -0.5
    %vm207 = vcmask 0
    %208 = vst.msk [vmem:[#allocation4] sm:$0x1] %vm207, %v185
    %209 = vst.msk [vmem:[#allocation6] sm:$0x1] %vm207, %v206
    %v210 = vadd.f32 %v185, %v206
    %211 = vst.msk [vmem:[#allocation2] sm:$0x1] %vm207, %v210
    // Predicated region
    $region18: #{vae_loss.1} parent=1 // pred_check
      _
    $region19: #{vae_loss.1} parent=1 // pred_check_branch
      %213 = sbr.rel (0) target = $region21
    $region20: #{vae_loss.1} parent=1 // pred_region
      %215 = vsyncadd [#allocation3], 0
      %s217 = sshll.u32 [#allocation2], 4
      %s218 = int_to_ptr.vmem [resolvable:$true] %s217
      %s219 = sshll.u32 %s4, 4
      %s220 = int_to_ptr.hbm [resolvable:$true] %s219
      %222 = dma.vmem_to_hbm [thread:$0]  %s218, 16, %s220, [#allocation3]
    $region21: #{vae_loss.1} parent=1 // pred_fallthru
      _
    // Predicated region
    $region22: #{vae_loss.1} parent=1 // pred_check
      _
    $region23: #{vae_loss.1} parent=1 // pred_check_branch
      %224 = sbr.rel (0) target = $region25
    $region24: #{vae_loss.1} parent=1 // pred_region
      %226 = vsyncadd [#allocation5], 0
      %s228 = sshll.u32 [#allocation4], 4
      %s229 = int_to_ptr.vmem [resolvable:$true] %s228
      %s230 = sshll.u32 %s5, 4
      %s231 = int_to_ptr.hbm [resolvable:$true] %s230
      %233 = dma.vmem_to_hbm [thread:$0]  %s229, 16, %s231, [#allocation5]
    $region25: #{vae_loss.1} parent=1 // pred_fallthru
      _
    // Predicated region
    $region26: #{vae_loss.1} parent=1 // pred_check
      _
    $region27: #{vae_loss.1} parent=1 // pred_check_branch
      %235 = sbr.rel (0) target = $region29
    $region28: #{vae_loss.1} parent=1 // pred_region
      %237 = vsyncadd [#allocation5], 0
      %s239 = sshll.u32 [#allocation6], 4
      %s240 = int_to_ptr.vmem [resolvable:$true] %s239
      %s241 = sshll.u32 %s6, 4
      %s242 = int_to_ptr.hbm [resolvable:$true] %s241
      %244 = dma.vmem_to_hbm [thread:$0]  %s240, 16, %s242, [#allocation5]
    $region29: #{vae_loss.1} parent=1 // pred_fallthru
      _
    // Predicated region
    $region30: #{vae_loss.1} parent=1 // pred_check
      _
    $region31: #{vae_loss.1} parent=1 // pred_check_branch
      %246 = sbr.rel (0) target = $region33
    $region32: #{vae_loss.1} parent=1 // pred_region
      %248 = dma.done [#allocation3], 16
    $region33: #{vae_loss.1} parent=1 // pred_fallthru
      _
    // Predicated region
    $region34: #{vae_loss.1} parent=1 // pred_check
      _
    $region35: #{vae_loss.1} parent=1 // pred_check_branch
      %250 = sbr.rel (0) target = $region37
    $region36: #{vae_loss.1} parent=1 // pred_region
      %252 = dma.done [#allocation5], 16
    $region37: #{vae_loss.1} parent=1 // pred_fallthru
      _
    // Predicated region
    $region38: #{vae_loss.1} parent=1 // pred_check
      _
    $region39: #{vae_loss.1} parent=1 // pred_check_branch
      %254 = sbr.rel (0) target = $region41
    $region40: #{vae_loss.1} parent=1 // pred_region
      %256 = dma.done [#allocation5], 16
    $region41: #{vae_loss.1} parent=1 // pred_fallthru
      _
    %257 = vsyncpa [#allocation3], 1
    %258 = vsyncpa [#allocation5], 1

</llo_original>
